<compile_context>
chip_gen: v7x
topology: tpu7x:2x2x1
jax: 0.10.0
libtpu: 0.0.40
codegen_flags: <defaults>
</compile_context>

<pallas_src>
import functools

import jax
import jax.numpy as jnp
from jax.experimental import pallas as pl
from jax.experimental.pallas import tpu as pltpu


def _round_up(a, b):
    return ((a + b - 1) // b) * b


# --------------------------------------------------------------------------- #
# Kernel: one (batch, query-tile) step of dot-product attention
# --------------------------------------------------------------------------- #
def _dpa_kernel(q_ref, v_ref, ctx_ref, attn_ref, *, s_valid, mxu_dtype):
    # q_ref:    (1, tq, Dp)  query rows for this (batch, tile)
    # v_ref:    (1, Sp, Dp)  all (padded) value rows of this batch element;
    #                        its block index is constant across the query-tile
    #                        grid axis, so it stays resident in VMEM.
    # ctx_ref:  (1, tq, Dp)  context output tile
    # attn_ref: (1, tq, Sp)  attention-weights output tile
    q = q_ref[0]
    v = v_ref[0]

    # score = q @ v.T on the MXU, f32 accumulation.
    s = jax.lax.dot_general(
        q.astype(mxu_dtype), v.astype(mxu_dtype),
        (((1,), (1,)), ((), ())),
        preferred_element_type=jnp.float32)

    # Mask padded key columns (rows added to value only to make S lane-dense).
    sp = s.shape[-1]
    if s_valid < sp:
        col = jax.lax.broadcasted_iota(jnp.int32, s.shape, 1)
        s = jnp.where(col < s_valid, s, -1e30)

    # Row softmax — matches F.softmax(score.view(-1, S), dim=1).
    s = s - jnp.max(s, axis=-1, keepdims=True)
    p = jnp.exp(s)
    p = p / jnp.sum(p, axis=-1, keepdims=True)

    # context = attn @ value on the MXU, f32 accumulation.
    ctx = jnp.dot(p.astype(mxu_dtype), v.astype(mxu_dtype),
                  preferred_element_type=jnp.float32)

    ctx_ref[0] = ctx.astype(ctx_ref.dtype)
    attn_ref[0] = p.astype(attn_ref.dtype)


# --------------------------------------------------------------------------- #
# Wrapper: padding to (8, 128)-friendly shapes, query-axis tiling, grid setup
# --------------------------------------------------------------------------- #
def dot_product_attention(query, value, *, tq=256, mxu_dtype=jnp.float32,
                          vmem_limit_bytes=None):
    """query: (B, Q, D), value: (B, S, D) -> (context (B, Q, D), attn (B, Q, S))."""
    B, L, D = query.shape
    Bv, S, Dv = value.shape
    assert B == Bv and D == Dv, (query.shape, value.shape)

    # TODO(synk): the PyTorch forward's print(query.size()) / print(value.size())
    # debug prints are host-side side effects with no compute — omitted.

    Dp = _round_up(D, 128)                 # lane-dense hidden dim
    Sp = _round_up(S, 128)                 # lane-dense key/attn dim
    tq = max(8, min(_round_up(tq, 8), _round_up(L, 8)))
    Lp = _round_up(L, tq)                  # query rows, multiple of the tile

    q = query.astype(jnp.float32)
    v = value.astype(jnp.float32)
    if (Lp, Dp) != (L, D):
        q = jnp.pad(q, ((0, 0), (0, Lp - L), (0, Dp - D)))
    if (Sp, Dp) != (S, D):
        v = jnp.pad(v, ((0, 0), (0, Sp - S), (0, Dp - D)))

    n_tiles = Lp // tq
    kernel = functools.partial(_dpa_kernel, s_valid=S, mxu_dtype=mxu_dtype)

    cp_kwargs = dict(dimension_semantics=("parallel", "parallel"))
    if vmem_limit_bytes is not None:       # per-generation VMEM budget knob
        cp_kwargs["vmem_limit_bytes"] = vmem_limit_bytes

    ctx, attn = pl.pallas_call(
        kernel,
        out_shape=(jax.ShapeDtypeStruct((B, Lp, Dp), jnp.float32),
                   jax.ShapeDtypeStruct((B, Lp, Sp), jnp.float32)),
        grid_spec=pltpu.PrefetchScalarGridSpec(
            num_scalar_prefetch=0,
            grid=(B, n_tiles),
            in_specs=[
                pl.BlockSpec((1, tq, Dp), lambda b, i: (b, i, 0)),   # query tile
                pl.BlockSpec((1, Sp, Dp), lambda b, i: (b, 0, 0)),   # value: resident per batch
            ],
            out_specs=[
                pl.BlockSpec((1, tq, Dp), lambda b, i: (b, i, 0)),   # context
                pl.BlockSpec((1, tq, Sp), lambda b, i: (b, i, 0)),   # attn weights
            ],
        ),
        compiler_params=pltpu.CompilerParams(**cp_kwargs),
    )(q, v)

    return ctx[:, :L, :D], attn[:, :L, :S]


# --------------------------------------------------------------------------- #
if __name__ == "__main__":
    key = jax.random.PRNGKey(0)
    B, Q, S, D = 2, 16, 8, 32   # small shapes consistent with the module

    query = jax.random.normal(jax.random.fold_in(key, 1), (B, Q, D), jnp.float32)
    value = jax.random.normal(jax.random.fold_in(key, 2), (B, S, D), jnp.float32)

    # f32 MXU operands: bit-faithful to the PyTorch reference.
    fwd_f32 = jax.jit(functools.partial(dot_product_attention, mxu_dtype=jnp.float32))
    ctx, attn = fwd_f32(query, value)
    jax.block_until_ready((ctx, attn))
    assert ctx.shape == (B, Q, D) and attn.shape == (B, Q, S), (ctx.shape, attn.shape)

    # Pure-JAX reference mirroring the PyTorch forward.
    score = jnp.einsum("bqd,bsd->bqs", query, value,
                       precision=jax.lax.Precision.HIGHEST)
    ref_attn = jax.nn.softmax(score, axis=-1)
    ref_ctx = jnp.einsum("bqs,bsd->bqd", ref_attn, value,
                         precision=jax.lax.Precision.HIGHEST)
    assert bool(jnp.allclose(attn, ref_attn, atol=2e-3, rtol=2e-3))
    assert bool(jnp.allclose(ctx, ref_ctx, atol=2e-3, rtol=2e-3))

    # bf16 MXU operands with f32 accumulation — the fast path on v6e/v7x.
    fwd_bf16 = jax.jit(functools.partial(dot_product_attention, mxu_dtype=jnp.bfloat16))
    ctx16, attn16 = fwd_bf16(query, value)
    jax.block_until_ready((ctx16, attn16))
    assert bool(jnp.all(jnp.isfinite(ctx16))) and bool(jnp.all(jnp.isfinite(attn16)))

    print("KERNEL_OK")
</pallas_src>

<mosaic_0001>
module attributes {stable_mosaic.version = 11 : i64} {
  func.func @_dpa_kernel(%arg0: i32, %arg1: i32, %arg2: memref<1x16x128xf32, #tpu.memory_space<vmem>>, %arg3: memref<1x128x128xf32, #tpu.memory_space<vmem>>, %arg4: memref<1x16x128xf32, #tpu.memory_space<vmem>>, %arg5: memref<1x16x128xf32, #tpu.memory_space<vmem>>) attributes {dimension_semantics = [#tpu.dimension_semantics<parallel>, #tpu.dimension_semantics<parallel>], iteration_bounds = array<i64: 2, 1>, scalar_prefetch = 0 : i64, scratch_operands = 0 : i64, tpu.core_type = #tpu.core_type<tc>, window_params = [{transform_indices = @transform_0, window_bounds = array<i64: 1, 16, 128>}, {transform_indices = @transform_1, window_bounds = array<i64: 1, 128, 128>}, {transform_indices = @transform_2, window_bounds = array<i64: 1, 16, 128>}, {transform_indices = @transform_3, window_bounds = array<i64: 1, 16, 128>}]} {
    %c0 = arith.constant 0 : index
    %c0_0 = arith.constant 0 : index
    %c0_1 = arith.constant 0 : index
    %0 = vector.load %arg2[%c0, %c0_0, %c0_1] : memref<1x16x128xf32, #tpu.memory_space<vmem>>, vector<1x16x128xf32>
    %1 = vector.shape_cast %0 : vector<1x16x128xf32> to vector<16x128xf32>
    %c0_2 = arith.constant 0 : index
    %c0_3 = arith.constant 0 : index
    %c0_4 = arith.constant 0 : index
    %2 = vector.load %arg3[%c0_2, %c0_3, %c0_4] : memref<1x128x128xf32, #tpu.memory_space<vmem>>, vector<1x128x128xf32>
    %3 = vector.shape_cast %2 : vector<1x128x128xf32> to vector<128x128xf32>
    %cst = arith.constant dense<0.000000e+00> : vector<16x128xf32>
    %4 = tpu.matmul %1, %3, %cst {dimension_numbers = #tpu.dot_dimension_numbers<[1], [1], [0], [0], [0, 0, 1, 0], [], []>} : vector<16x128xf32>, vector<128x128xf32>, vector<16x128xf32> -> vector<16x128xf32>
    %5 = tpu.iota {dimensions = array<i32: 1>} : vector<16x128xi32>
    %c8_i32 = arith.constant 8 : i32
    %6 = vector.broadcast %c8_i32 : i32 to vector<16x128xi32>
    %7 = arith.cmpi slt, %5, %6 : vector<16x128xi32>
    %cst_5 = arith.constant -1.000000e+30 : f32
    %8 = vector.broadcast %cst_5 : f32 to vector<16x128xf32>
    %9 = arith.select %7, %4, %8 : vector<16x128xi1>, vector<16x128xf32>
    %cst_6 = arith.constant dense<0xFF800000> : vector<16xf32>
    %10 = vector.multi_reduction <maximumf>, %9, %cst_6 [1] : vector<16x128xf32> to vector<16xf32>
    %11 = vector.shape_cast %10 : vector<16xf32> to vector<16x1xf32>
    %12 = vector.broadcast %11 : vector<16x1xf32> to vector<16x128xf32>
    %13 = arith.subf %9, %12 : vector<16x128xf32>
    %14 = math.exp %13 : vector<16x128xf32>
    %cst_7 = arith.constant dense<0.000000e+00> : vector<16xf32>
    %15 = vector.multi_reduction <add>, %14, %cst_7 [1] : vector<16x128xf32> to vector<16xf32>
    %16 = vector.shape_cast %15 : vector<16xf32> to vector<16x1xf32>
    %17 = vector.broadcast %16 : vector<16x1xf32> to vector<16x128xf32>
    %18 = arith.divf %14, %17 : vector<16x128xf32>
    %cst_8 = arith.constant dense<0.000000e+00> : vector<16x128xf32>
    %19 = tpu.matmul %18, %3, %cst_8 {dimension_numbers = #tpu.dot_dimension_numbers<[1], [0], [0], [1], [0, 0, 1, 1], [], []>} : vector<16x128xf32>, vector<128x128xf32>, vector<16x128xf32> -> vector<16x128xf32>
    %c0_9 = arith.constant 0 : index
    %c0_10 = arith.constant 0 : index
    %c0_11 = arith.constant 0 : index
    %20 = vector.load %arg4[%c0_9, %c0_10, %c0_11] : memref<1x16x128xf32, #tpu.memory_space<vmem>>, vector<1x16x128xf32>
    %21 = vector.shape_cast %20 : vector<1x16x128xf32> to vector<16x128xf32>
    %22 = vector.shape_cast %19 : vector<16x128xf32> to vector<1x16x128xf32>
    tpu.vector_store %arg4[%c0_9, %c0_10, %c0_11], %22 {strides = array<i32>} : memref<1x16x128xf32, #tpu.memory_space<vmem>>, vector<1x16x128xf32>,
    %c0_12 = arith.constant 0 : index
    %c0_13 = arith.constant 0 : index
    %c0_14 = arith.constant 0 : index
    %23 = vector.load %arg5[%c0_12, %c0_13, %c0_14] : memref<1x16x128xf32, #tpu.memory_space<vmem>>, vector<1x16x128xf32>
    %24 = vector.shape_cast %23 : vector<1x16x128xf32> to vector<16x128xf32>
    %25 = vector.shape_cast %18 : vector<16x128xf32> to vector<1x16x128xf32>
    tpu.vector_store %arg5[%c0_12, %c0_13, %c0_14], %25 {strides = array<i32>} : memref<1x16x128xf32, #tpu.memory_space<vmem>>, vector<1x16x128xf32>,
    return
  }
  func.func @transform_0(%arg0: i32, %arg1: i32) -> (i32, i32, i32) {
    %c0_i32 = arith.constant 0 : i32
    %c0_i32_0 = arith.constant 0 : i32
    return %arg0, %arg1, %c0_i32 : i32, i32, i32
  }
  func.func @transform_1(%arg0: i32, %arg1: i32) -> (i32, i32, i32) {
    %c0_i32 = arith.constant 0 : i32
    %c0_i32_0 = arith.constant 0 : i32
    %c0_i32_1 = arith.constant 0 : i32
    return %arg0, %c0_i32, %c0_i32_0 : i32, i32, i32
  }
  func.func @transform_2(%arg0: i32, %arg1: i32) -> (i32, i32, i32) {
    %c0_i32 = arith.constant 0 : i32
    %c0_i32_0 = arith.constant 0 : i32
    return %arg0, %arg1, %c0_i32 : i32, i32, i32
  }
  func.func @transform_3(%arg0: i32, %arg1: i32) -> (i32, i32, i32) {
    %c0_i32 = arith.constant 0 : i32
    %c0_i32_0 = arith.constant 0 : i32
    return %arg0, %arg1, %c0_i32 : i32, i32, i32
  }
}

</mosaic_0001>

<llo_original>
// kernel: dot_product_attention.1
$region0: #{dot_product_attention.1}
  #allocation0 [shape = 'u32[]', space=smem, size = 0x4, offset = 0x4, fixed_abs, tag = 'smem constant byte address 0x4 - core index']
  #allocation1 [shape = 'u32[144,128]{1,0:T(1,128)}', space=vmem, size = 0x12000, scoped, tag = 'internal scratch']
  %s0 = inlined_call_operand.vmem [shape: f32[2,16,128], index: 0, kind: input, shape index: {}]
  %s1 = inlined_call_operand.vmem [shape: f32[2,128,128], index: 1, kind: input, shape index: {}]
  %s2 = inlined_call_operand.hbm [shape: f32[2,16,128], index: 2, kind: output, shape index: {0}]
  %s3 = inlined_call_operand.vmem [shape: f32[2,16,128], index: 3, kind: output, shape index: {1}]
  %4 = xla_tuple %s2, %s3
  %s5 = sld [smem:[#allocation0]]
  $region49: #{dot_product_attention.1} parent=0
    _
  %s7 = ssub.s32 1, %s5
  %s8 = scalar_select 0, %s7, %s5
  $region1: #{dot_product_attention.1} parent=0
    #allocation2 [shape = 'u8[16384]{0}', space=vmem, size = 0x4000, scoped, tag = 'output window, operand 0']
    #allocation3 [shape = 's32[2]{0}', space=sflag, size = 0x8, scoped, tag = 'scoped memory for dot_product_attention.1']
    %9 = vsyncpa [#allocation3], 0
    %s10 = scalar_lea.sflag [#allocation3], 1
    %11 = vsyncpa %s10, 0
    loop: start=0, step=1, limit=4
    $region2: #{dot_product_attention.1} parent=1 // loop_pre_header
      _
    $region3: #{dot_product_attention.1} parent=1 // loop_header
      %s13 = sphi 0, %s17
      %p14 = scmp.ge.s32.totalorder %s13, 4
      %s20 = sphi 0, %s32
      %s21 = sphi 0, %s28
      %s22 = sphi 0, %s20
      %s23 = sphi 0, %s21
      %s24 = sphi 0, %s22
      %s25 = sphi 0, %s23
      %s37 = sphi 0, %s39
      %s40 = sphi 0, %s37
      %s41 = sphi 0, %s40
      %s57 = sphi 0, %s41
      %s63 = sphi 0, %s65
      %s66 = sphi 0, %s63
      %s67 = sphi 0, %s66
      %s83 = sphi 0, %s67
      %s91 = sphi 0, %s93
      %s94 = sphi 0, %s91
      %s95 = sphi 0, %s94
      %s111 = sphi 0, %s95
      %s119 = sphi 0, %s121
      %s122 = sphi 0, %s119
      %s123 = sphi 0, %s122
      %s139 = sphi 0, %s123
    $region4: #{dot_product_attention.1} parent=1 // loop_header_branch
      %16 = sbr.rel (%p14) target = $region8
    $region5: #{dot_product_attention.1} parent=1 // loop_body
      %s18 = ssub.s32 %s13, 1
      %s19 = ssub.s32 %s13, 2
      %s26 = sadd.s32 1, %s21
      %p27 = scmp.ge.s32.totalorder %s26, 1
      %s28 = scalar_select %p27, 0, %s26
      %s29 = sadd.s32 1, %s20
      %s30 = scalar_select %p27, %s29, %s20
      %p31 = scmp.ge.s32.totalorder %s30, 2
      %s32 = scalar_select %p31, 0, %s30
      %s33 = ssub.s32 %s20, %s32
      %s34 = ssub.s32 %s21, %s28
      %s35 = sor.u32 %s33, %s34
      %p36 = scmp.eq.s32.totalorder %s35, 0
      %s38 = sadd.s32 %s37, 1
      %s39 = scalar_select %p36, %s37, %s38
      %p42 = pneg %p36
      %p43 = scmp.eq.s32.totalorder %s13, 1
      %p44 = por %p42, %p43
      %p45 = scmp.ne.s32.totalorder %s37, %s40
      %p46 = scmp.eq.s32.totalorder %s13, 0
      %p47 = por %p45, %p46
      %p48 = scmp.ne.s32.totalorder %s37, %s40
      %p49 = scmp.eq.s32.totalorder %s18, 1
      %p50 = por %p48, %p49
      %p51 = scmp.ne.s32.totalorder %s40, %s41
      %p52 = scmp.eq.s32.totalorder %s18, 0
      %p53 = por %p51, %p52
      %p54 = scmp.ne.s32.totalorder %s40, %s41
      %p55 = scmp.eq.s32.totalorder %s19, 1
      %p56 = por %p54, %p55
      %p58 = scmp.ne.s32.totalorder %s41, %s57
      %p59 = scmp.eq.s32.totalorder %s19, 0
      %p60 = por %p58, %p59
      %s61 = ssub.s32 %s20, %s32
      %p62 = scmp.eq.s32.totalorder %s61, 0
      %s64 = sadd.s32 %s63, 1
      %s65 = scalar_select %p62, %s63, %s64
      %p68 = pneg %p62
      %p69 = scmp.eq.s32.totalorder %s13, 1
      %p70 = por %p68, %p69
      %p71 = scmp.ne.s32.totalorder %s63, %s66
      %p72 = scmp.eq.s32.totalorder %s13, 0
      %p73 = por %p71, %p72
      %p74 = scmp.ne.s32.totalorder %s63, %s66
      %p75 = scmp.eq.s32.totalorder %s18, 1
      %p76 = por %p74, %p75
      %p77 = scmp.ne.s32.totalorder %s66, %s67
      %p78 = scmp.eq.s32.totalorder %s18, 0
      %p79 = por %p77, %p78
      %p80 = scmp.ne.s32.totalorder %s66, %s67
      %p81 = scmp.eq.s32.totalorder %s19, 1
      %p82 = por %p80, %p81
      %p84 = scmp.ne.s32.totalorder %s67, %s83
      %p85 = scmp.eq.s32.totalorder %s19, 0
      %p86 = por %p84, %p85
      %s87 = ssub.s32 %s20, %s32
      %s88 = ssub.s32 %s21, %s28
      %s89 = sor.u32 %s87, %s88
      %p90 = scmp.eq.s32.totalorder %s89, 0
      %s92 = sadd.s32 %s91, 1
      %s93 = scalar_select %p90, %s91, %s92
      %p96 = pneg %p90
      %p97 = scmp.eq.s32.totalorder %s13, 1
      %p98 = por %p96, %p97
      %p99 = scmp.ne.s32.totalorder %s91, %s94
      %p100 = scmp.eq.s32.totalorder %s13, 0
      %p101 = por %p99, %p100
      %p102 = scmp.ne.s32.totalorder %s91, %s94
      %p103 = scmp.eq.s32.totalorder %s18, 1
      %p104 = por %p102, %p103
      %p105 = scmp.ne.s32.totalorder %s94, %s95
      %p106 = scmp.eq.s32.totalorder %s18, 0
      %p107 = por %p105, %p106
      %p108 = scmp.ne.s32.totalorder %s94, %s95
      %p109 = scmp.eq.s32.totalorder %s19, 1
      %p110 = por %p108, %p109
      %p112 = scmp.ne.s32.totalorder %s95, %s111
      %p113 = scmp.eq.s32.totalorder %s19, 0
      %p114 = por %p112, %p113
      %s115 = ssub.s32 %s20, %s32
      %s116 = ssub.s32 %s21, %s28
      %s117 = sor.u32 %s115, %s116
      %p118 = scmp.eq.s32.totalorder %s117, 0
      %s120 = sadd.s32 %s119, 1
      %s121 = scalar_select %p118, %s119, %s120
      %p124 = pneg %p118
      %p125 = scmp.eq.s32.totalorder %s13, 1
      %p126 = por %p124, %p125
      %p127 = scmp.ne.s32.totalorder %s119, %s122
      %p128 = scmp.eq.s32.totalorder %s13, 0
      %p129 = por %p127, %p128
      %p130 = scmp.ne.s32.totalorder %s119, %s122
      %p131 = scmp.eq.s32.totalorder %s18, 1
      %p132 = por %p130, %p131
      %p133 = scmp.ne.s32.totalorder %s122, %s123
      %p134 = scmp.eq.s32.totalorder %s18, 0
      %p135 = por %p133, %p134
      %p136 = scmp.ne.s32.totalorder %s122, %s123
      %p137 = scmp.eq.s32.totalorder %s19, 1
      %p138 = por %p136, %p137
      %p140 = scmp.ne.s32.totalorder %s123, %s139
      %p141 = scmp.eq.s32.totalorder %s19, 0
      %p142 = por %p140, %p141
      %p143 = scmp.le.s32.totalorder 1, %s13
      %p144 = scmp.lt.s32.totalorder %s13, 3
      %p145 = pnand %p143, %p144
      %p146 = pneg %p145
      // Predicated region
      $region9: #{dot_product_attention.1} parent=5 // pred_check
        _
      $region10: #{dot_product_attention.1} parent=5 // pred_check_branch
        %148 = sbr.rel (%p145) target = $region12
      $region11: #{dot_product_attention.1} parent=5 // pred_region
        %s149 = ssub.s32 %s13, 1
      $region12: #{dot_product_attention.1} parent=5 // pred_fallthru
        _
      %p150 = scmp.lt.s32.totalorder %s13, 2
      // Predicated region
      $region13: #{dot_product_attention.1} parent=5 // pred_check
        %p151 = pneg %p150
      $region14: #{dot_product_attention.1} parent=5 // pred_check_branch
        %153 = sbr.rel (%p151) target = $region16
      $region15: #{dot_product_attention.1} parent=5 // pred_region
        // Predicated region
        $region17: #{dot_product_attention.1} parent=15 // pred_check
          %p154 = pneg %p47
        $region18: #{dot_product_attention.1} parent=15 // pred_check_branch
          %156 = sbr.rel (%p154) target = $region20
        $region19: #{dot_product_attention.1} parent=15 // pred_region
          %s157 = smul.u32 2, %s21
          %p158 = scmp.lt.s32.totalorder %s20, 1
          %s159 = scalar_select %p158, %s20, 1
          %p160 = scmp.lt.s32.totalorder %s157, 1
          %s161 = scalar_select %p160, %s157, 1
          %s162 = smul.addr %s159, 2
          %s163 = sadd.s32 %s161, %s162
          %s164 = smul.addr %s163, 8
          %s165 = scalar_lea.vmem %s0, %s164
          %s166 = smul.u32 2, %s21
        $region20: #{dot_product_attention.1} parent=15 // pred_fallthru
          _
        // Predicated region
        $region21: #{dot_product_attention.1} parent=15 // pred_check
          %p167 = pneg %p73
        $region22: #{dot_product_attention.1} parent=15 // pred_check_branch
          %169 = sbr.rel (%p167) target = $region24
        $region23: #{dot_product_attention.1} parent=15 // pred_region
          %p170 = scmp.lt.s32.totalorder %s20, 1
          %s171 = scalar_select %p170, %s20, 1
          %s172 = smul.addr %s171, 16
          %s173 = smul.addr %s172, 8
          %s174 = scalar_lea.vmem %s1, %s173
        $region24: #{dot_product_attention.1} parent=15 // pred_fallthru
          _
      $region16: #{dot_product_attention.1} parent=5 // pred_fallthru
        _
      %p175 = scmp.le.s32.totalorder 1, %s13
      %p176 = scmp.lt.s32.totalorder %s13, 3
      %p177 = pnand %p175, %p176
      %p178 = pneg %p177
      // Predicated region
      $region25: #{dot_product_attention.1} parent=5 // pred_check
        _
      $region26: #{dot_product_attention.1} parent=5 // pred_check_branch
        %180 = sbr.rel (%p177) target = $region28
      $region27: #{dot_product_attention.1} parent=5 // pred_region
        %s181 = ssub.s32 %s13, 1
        %s182 = smul.u32 2, %s23
        %p183 = scmp.lt.s32.totalorder %s22, 1
        %s184 = scalar_select %p183, %s22, 1
        %p185 = scmp.lt.s32.totalorder %s182, 1
        %s186 = scalar_select %p185, %s182, 1
        %s187 = smul.addr %s184, 2
        %s188 = sadd.s32 %s186, %s187
        %s189 = smul.addr %s188, 8
        %s190 = scalar_lea.vmem %s0, %s189
        %p191 = pneg %p53
        %p192 = pneg %p50
        %p193 = scmp.lt.s32.totalorder %s22, 1
        %s194 = scalar_select %p193, %s22, 1
        %s195 = smul.addr %s194, 16
        %s196 = smul.addr %s195, 8
        %s197 = scalar_lea.vmem %s1, %s196
        %p198 = pneg %p79
        %p199 = pneg %p76
        %p200 = pneg %p107
        %p201 = pneg %p104
        %s202 = sand.u32 %s94, 1
        %s203 = scalar_lea.sflag [#allocation3], %s202
        %s204 = sand.u32 %s94, 1
        %s205 = smul.addr %s204, 16
        %s206 = scalar_lea.vmem [#allocation2], %s205
        %p207 = pneg %p135
        %p208 = pneg %p132
        %s209 = smul.u32 2, %s23
        %p210 = scmp.lt.s32.totalorder %s22, 1
        %s211 = scalar_select %p210, %s22, 1
        %p212 = scmp.lt.s32.totalorder %s209, 1
        %s213 = scalar_select %p212, %s209, 1
        %s214 = smul.addr %s211, 2
        %s215 = sadd.s32 %s213, %s214
        %s216 = smul.addr %s215, 8
        %s217 = scalar_lea.vmem %s3, %s216
        %s218 = smul.u32 2, %s23
        %p219 = scmp.lt.s32.totalorder %s22, 1
        %s220 = scalar_select %p219, %s22, 1
        %p221 = scmp.lt.s32.totalorder %s218, 1
        %s222 = scalar_select %p221, %s218, 1
        %s223 = smul.addr %s220, 2
        %s224 = sadd.s32 %s222, %s223
        %s225 = smul.addr %s224, 8
        %s226 = scalar_lea.vmem %s0, %s225
        %s227 = smul.u32 2, %s23
        %p228 = scmp.lt.s32.totalorder %s22, 1
        %s229 = scalar_select %p228, %s22, 1
        %s230 = smul.addr %s229, 16
        %s231 = smul.addr %s230, 8
        %s232 = scalar_lea.vmem %s1, %s231
        %s233 = smul.u32 2, %s23
        %s234 = smul.u32 2, %s23
        %p235 = scmp.lt.s32.totalorder %s22, 1
        %s236 = scalar_select %p235, %s22, 1
        %p237 = scmp.lt.s32.totalorder %s234, 1
        %s238 = scalar_select %p237, %s234, 1
        %s239 = smul.addr %s236, 2
        %s240 = sadd.s32 %s238, %s239
        %s241 = smul.addr %s240, 8
        %s242 = scalar_lea.vmem %s3, %s241
        %s243 = smul.u32 2, %s23
        %v244 = vld [vmem:[%s226] sm:$0xff]
        %v245 = vld [vmem:[%s226 + $0x8] sm:$0xff]
        %v246 = vld [vmem:[%s232] sm:$0xff]
        %v247 = vld [vmem:[%s232 + $0x8] sm:$0xff]
        %v248 = vld [vmem:[%s232 + $0x10] sm:$0xff]
        %v249 = vld [vmem:[%s232 + $0x18] sm:$0xff]
        %v250 = vld [vmem:[%s232 + $0x20] sm:$0xff]
        %v251 = vld [vmem:[%s232 + $0x28] sm:$0xff]
        %v252 = vld [vmem:[%s232 + $0x30] sm:$0xff]
        %v253 = vld [vmem:[%s232 + $0x38] sm:$0xff]
        %v254 = vld [vmem:[%s232 + $0x40] sm:$0xff]
        %v255 = vld [vmem:[%s232 + $0x48] sm:$0xff]
        %v256 = vld [vmem:[%s232 + $0x50] sm:$0xff]
        %v257 = vld [vmem:[%s232 + $0x58] sm:$0xff]
        %v258 = vld [vmem:[%s232 + $0x60] sm:$0xff]
        %v259 = vld [vmem:[%s232 + $0x68] sm:$0xff]
        %v260 = vld [vmem:[%s232 + $0x70] sm:$0xff]
        %v261 = vld [vmem:[%s232 + $0x78] sm:$0xff]
        %262 = vmatprep.subr.mxu0 0.0
        %263 = vmatpush1.xpose.msra.mxu0 %v246
        %264 = vmatprep.subr.mxu0 0.0
        %265 = vmatpush1.xpose.msra.mxu0 %v247
        %266 = vmatprep.subr.mxu0 0.0
        %267 = vmatpush1.xpose.msra.mxu0 %v248
        %268 = vmatprep.subr.mxu0 0.0
        %269 = vmatpush1.xpose.msra.mxu0 %v249
        %270 = vmatprep.subr.mxu0 0.0
        %271 = vmatpush1.xpose.msra.mxu0 %v250
        %272 = vmatprep.subr.mxu0 0.0
        %273 = vmatpush1.xpose.msra.mxu0 %v251
        %274 = vmatprep.subr.mxu0 0.0
        %275 = vmatpush1.xpose.msra.mxu0 %v252
        %276 = vmatprep.subr.mxu0 0.0
        %277 = vmatpush1.xpose.msra.mxu0 %v253
        %278 = vmatprep.subr.mxu0 0.0
        %279 = vmatpush1.xpose.msra.mxu0 %v254
        %280 = vmatprep.subr.mxu0 0.0
        %281 = vmatpush1.xpose.msra.mxu0 %v255
        %282 = vmatprep.subr.mxu0 0.0
        %283 = vmatpush1.xpose.msra.mxu0 %v256
        %284 = vmatprep.subr.mxu0 0.0
        %285 = vmatpush1.xpose.msra.mxu0 %v257
        %286 = vmatprep.subr.mxu0 0.0
        %287 = vmatpush1.xpose.msra.mxu0 %v258
        %288 = vmatprep.subr.mxu0 0.0
        %289 = vmatpush1.xpose.msra.mxu0 %v259
        %290 = vmatprep.subr.mxu0 0.0
        %291 = vmatpush1.xpose.msra.mxu0 %v260
        %292 = vmatprep.subr.mxu0 0.0
        %293 = vmatpush1.xpose.msra.mxu0 %v261
        %294 = vmatprep.subr.mxu0 0.0
        %295 = vmatpush1.xpose.msra.mxu0 0.0
        %296 = vmatprep.subr.mxu0 0.0
        %297 = vmatpush1.xpose.msra.mxu0 0.0
        %298 = vmatprep.subr.mxu0 0.0
        %299 = vmatpush1.xpose.msra.mxu0 0.0
        %300 = vmatprep.subr.mxu0 0.0
        %301 = vmatpush1.xpose.msra.mxu0 0.0
        %302 = vmatprep.subr.mxu0 0.0
        %303 = vmatpush1.xpose.msra.mxu0 0.0
        %304 = vmatprep.subr.mxu0 0.0
        %305 = vmatpush1.xpose.msra.mxu0 0.0
        %306 = vmatprep.subr.mxu0 0.0
        %307 = vmatpush1.xpose.msra.mxu0 0.0
        %308 = vmatprep.subr.mxu0 0.0
        %309 = vmatpush1.xpose.msra.mxu0 0.0
        %310 = vmatprep.subr.mxu0 0.0
        %311 = vmatpush1.xpose.msra.mxu0 0.0
        %312 = vmatprep.subr.mxu0 0.0
        %313 = vmatpush1.xpose.msra.mxu0 0.0
        %314 = vmatprep.subr.mxu0 0.0
        %315 = vmatpush1.xpose.msra.mxu0 0.0
        %316 = vmatprep.subr.mxu0 0.0
        %317 = vmatpush1.xpose.msra.mxu0 0.0
        %318 = vmatprep.subr.mxu0 0.0
        %319 = vmatpush1.xpose.msra.mxu0 0.0
        %320 = vmatprep.subr.mxu0 0.0
        %321 = vmatpush1.xpose.msra.mxu0 0.0
        %322 = vmatprep.subr.mxu0 0.0
        %323 = vmatpush1.xpose.msra.mxu0 0.0
        %324 = vmatprep.subr.mxu0 0.0
        %325 = vmatpush1.xpose.msra.mxu0 0.0
        %326 = vmatprep.mubr.f32.mxu0 0.0
        %327 = vmatmul.mubr.f32.gmra.mrb[0].mxu0 %v244
        %v328 = vpop.f32.mrb[0].mxu0
        %v329 = vadd.f32 0.0, %v328
        %v330 = vpop.f32.mrb[0].mxu0
        %331 = vmatprep.mubr.f32.mxu0 0.0
        %332 = vmatmul.mubr.f32.gmra.mrb[0].mxu0 %v245
        %v333 = vpop.f32.mrb[0].mxu0
        %v334 = vadd.f32 0.0, %v333
        %v335 = vpop.f32.mrb[0].mxu0
        %336 = vdwg.mxu0
        %v337 = vlaneseq
        %v338 = vand.u32 %v337, 127
        %vm339 = vcmp.lt.s32.totalorder %v338, 8
        %v340 = vsel %vm339, %v329, -1e+30
        %v341 = vsel %vm339, %v334, -1e+30
        %342 = vmax.xlane.f32.xlu0 %v340
        %v343 = vpop.xlane.xlu0 %342
        %344 = vmax.xlane.f32.xlu0 %v341
        %v345 = vpop.xlane.xlu0 %344
        %v346 = vsub.f32 %v340, %v343
        %v347 = vsub.f32 %v341, %v345
        %v348 = vmul.f32 %v346, 1.442695
        %v349 = vpow.pop %v348
        %v350 = vmul.f32 %v347, 1.442695
        %v351 = vpow.pop %v350
        %352 = vadd.xlane.f32.xlu0 %v349
        %v353 = vpop.xlane.xlu0 %352
        %354 = vadd.xlane.f32.xlu0 %v351
        %v355 = vpop.xlane.xlu0 %354
        %v356 = vrcp.pop %v353
        %v357 = vmul.f32 %v349, %v356
        %v358 = vrcp.pop %v355
        %v359 = vmul.f32 %v351, %v358
        %360 = vmatprep.subr.mxu0 0.0
        %361 = vmatpush1.msra.mxu0 %v246
        %362 = vmatprep.subr.mxu0 0.0
        %363 = vmatpush1.msra.mxu0 %v247
        %364 = vmatprep.subr.mxu0 0.0
        %365 = vmatpush1.msra.mxu0 %v248
        %366 = vmatprep.subr.mxu0 0.0
        %367 = vmatpush1.msra.mxu0 %v249
        %368 = vmatprep.subr.mxu0 0.0
        %369 = vmatpush1.msra.mxu0 %v250
        %370 = vmatprep.subr.mxu0 0.0
        %371 = vmatpush1.msra.mxu0 %v251
        %372 = vmatprep.subr.mxu0 0.0
        %373 = vmatpush1.msra.mxu0 %v252
        %374 = vmatprep.subr.mxu0 0.0
        %375 = vmatpush1.msra.mxu0 %v253
        %376 = vmatprep.subr.mxu0 0.0
        %377 = vmatpush1.msra.mxu0 %v254
        %378 = vmatprep.subr.mxu0 0.0
        %379 = vmatpush1.msra.mxu0 %v255
        %380 = vmatprep.subr.mxu0 0.0
        %381 = vmatpush1.msra.mxu0 %v256
        %382 = vmatprep.subr.mxu0 0.0
        %383 = vmatpush1.msra.mxu0 %v257
        %384 = vmatprep.subr.mxu0 0.0
        %385 = vmatpush1.msra.mxu0 %v258
        %386 = vmatprep.subr.mxu0 0.0
        %387 = vmatpush1.msra.mxu0 %v259
        %388 = vmatprep.subr.mxu0 0.0
        %389 = vmatpush1.msra.mxu0 %v260
        %390 = vmatprep.subr.mxu0 0.0
        %391 = vmatpush1.msra.mxu0 %v261
        %392 = vmatprep.subr.mxu0 0.0
        %393 = vmatpush1.msra.mxu0 0.0
        %394 = vmatprep.subr.mxu0 0.0
        %395 = vmatpush1.msra.mxu0 0.0
        %396 = vmatprep.subr.mxu0 0.0
        %397 = vmatpush1.msra.mxu0 0.0
        %398 = vmatprep.subr.mxu0 0.0
        %399 = vmatpush1.msra.mxu0 0.0
        %400 = vmatprep.subr.mxu0 0.0
        %401 = vmatpush1.msra.mxu0 0.0
        %402 = vmatprep.subr.mxu0 0.0
        %403 = vmatpush1.msra.mxu0 0.0
        %404 = vmatprep.subr.mxu0 0.0
        %405 = vmatpush1.msra.mxu0 0.0
        %406 = vmatprep.subr.mxu0 0.0
        %407 = vmatpush1.msra.mxu0 0.0
        %408 = vmatprep.subr.mxu0 0.0
        %409 = vmatpush1.msra.mxu0 0.0
        %410 = vmatprep.subr.mxu0 0.0
        %411 = vmatpush1.msra.mxu0 0.0
        %412 = vmatprep.subr.mxu0 0.0
        %413 = vmatpush1.msra.mxu0 0.0
        %414 = vmatprep.subr.mxu0 0.0
        %415 = vmatpush1.msra.mxu0 0.0
        %416 = vmatprep.subr.mxu0 0.0
        %417 = vmatpush1.msra.mxu0 0.0
        %418 = vmatprep.subr.mxu0 0.0
        %419 = vmatpush1.msra.mxu0 0.0
        %420 = vmatprep.subr.mxu0 0.0
        %421 = vmatpush1.msra.mxu0 0.0
        %422 = vmatprep.subr.mxu0 0.0
        %423 = vmatpush1.msra.mxu0 0.0
        %424 = vmatprep.mubr.f32.mxu0 0.0
        %425 = vmatmul.mubr.f32.gmra.mrb[0].mxu0 %v357
        %v426 = vpop.f32.mrb[0].mxu0
        %v427 = vadd.f32 0.0, %v426
        %v428 = vpop.f32.mrb[0].mxu0
        %429 = vmatprep.mubr.f32.mxu0 0.0
        %430 = vmatmul.mubr.f32.gmra.mrb[0].mxu0 %v359
        %v431 = vpop.f32.mrb[0].mxu0
        %v432 = vadd.f32 0.0, %v431
        %v433 = vpop.f32.mrb[0].mxu0
        %434 = vdwg.mxu0
        %435 = vst [vmem:[%s206] sm:$0xff] %v427
        %436 = vst [vmem:[%s206 + $0x8] sm:$0xff] %v432
        %437 = vst [vmem:[%s242] sm:$0xff] %v357
        %438 = vst [vmem:[%s242 + $0x8] sm:$0xff] %v359
        %s439 = sand.u32 %s94, 1
        %s440 = scalar_lea.sflag [#allocation3], %s439
        %s441 = sand.u32 %s94, 1
        %s442 = smul.addr %s441, 16
        %s443 = scalar_lea.vmem [#allocation2], %s442
        %s444 = smul.u32 2, %s23
        %p445 = scmp.lt.s32.totalorder %s22, 1
        %s446 = scalar_select %p445, %s22, 1
        %p447 = scmp.lt.s32.totalorder %s444, 1
        %s448 = scalar_select %p447, %s444, 1
        %s449 = smul.addr %s446, 2
        %s450 = sadd.s32 %s448, %s449
        %s451 = smul.addr %s450, 8
        %s452 = scalar_lea.vmem %s3, %s451
        // Predicated region
        $region29: #{dot_product_attention.1} parent=27 // pred_check
          %p453 = pneg %p104
        $region30: #{dot_product_attention.1} parent=27 // pred_check_branch
          %455 = sbr.rel (%p453) target = $region32
        $region31: #{dot_product_attention.1} parent=27 // pred_region
          %s456 = smul.u32 2, %s23
          %s458 = ssub.s32 256, 256
          %459 = vsyncadd %s440, %s458
          %s460 = smul.addr %s22, 2
          %s461 = sadd.s32 %s456, %s460
          %s462 = smul.addr %s461, 128
          %s463 = scalar_lea.hbm %s2, %s462
          %s464 = sshll.u32 %s443, 4
          %s465 = int_to_ptr.vmem [resolvable:$true] %s464
          %470 = dma.vmem_to_hbm [thread:$0]  %s465, 256, %s463, %s440, 128, 128, 8
        $region32: #{dot_product_attention.1} parent=27 // pred_fallthru
          _
        // Predicated region
        $region33: #{dot_product_attention.1} parent=27 // pred_check
          %p471 = pneg %p132
        $region34: #{dot_product_attention.1} parent=27 // pred_check_branch
          %473 = sbr.rel (%p471) target = $region36
        $region35: #{dot_product_attention.1} parent=27 // pred_region
          %s474 = smul.u32 2, %s23
        $region36: #{dot_product_attention.1} parent=27 // pred_fallthru
          _
      $region28: #{dot_product_attention.1} parent=5 // pred_fallthru
        _
      %p475 = scmp.le.s32.totalorder 2, %s13
      // Predicated region
      $region37: #{dot_product_attention.1} parent=5 // pred_check
        %p476 = pneg %p475
      $region38: #{dot_product_attention.1} parent=5 // pred_check_branch
        %478 = sbr.rel (%p476) target = $region40
      $region39: #{dot_product_attention.1} parent=5 // pred_region
        %s479 = ssub.s32 %s13, 2
        // Predicated region
        $region41: #{dot_product_attention.1} parent=39 // pred_check
          %p480 = pneg %p110
        $region42: #{dot_product_attention.1} parent=39 // pred_check_branch
          %482 = sbr.rel (%p480) target = $region44
        $region43: #{dot_product_attention.1} parent=39 // pred_region
          %s483 = sand.u32 %s95, 1
          %s484 = scalar_lea.sflag [#allocation3], %s483
          %s485 = sand.u32 %s95, 1
          %s486 = smul.addr %s485, 16
          %s487 = scalar_lea.vmem [#allocation2], %s486
          %488 = dma.done %s484, 256
        $region44: #{dot_product_attention.1} parent=39 // pred_fallthru
          _
        // Predicated region
        $region45: #{dot_product_attention.1} parent=39 // pred_check
          %p489 = pneg %p138
        $region46: #{dot_product_attention.1} parent=39 // pred_check_branch
          %491 = sbr.rel (%p489) target = $region48
        $region47: #{dot_product_attention.1} parent=39 // pred_region
          %s492 = smul.u32 2, %s25
          %p493 = scmp.lt.s32.totalorder %s24, 1
          %s494 = scalar_select %p493, %s24, 1
          %p495 = scmp.lt.s32.totalorder %s492, 1
          %s496 = scalar_select %p495, %s492, 1
          %s497 = smul.addr %s494, 2
          %s498 = sadd.s32 %s496, %s497
          %s499 = smul.addr %s498, 8
          %s500 = scalar_lea.vmem %s3, %s499
        $region48: #{dot_product_attention.1} parent=39 // pred_fallthru
          _
      $region40: #{dot_product_attention.1} parent=5 // pred_fallthru
        _
    $region6: #{dot_product_attention.1} parent=1 // loop_footer
      %s17 = sadd.s32 1, %s13
    $region7: #{dot_product_attention.1} parent=1 // loop_footer_branch
      %12 = sbr.rel target = $region3
    $region8: #{dot_product_attention.1} parent=1 // loop_exit
      _
    %501 = vsyncpa [#allocation3], 1
    %s502 = scalar_lea.sflag [#allocation3], 1
    %503 = vsyncpa %s502, 1

</llo_original>
